<compile_context>
chip_gen: v6e
topology: v6e:2x2x1
jax: 0.10.0
libtpu: 0.0.40
codegen_flags: <defaults>
</compile_context>

<pallas_src>
import functools

import jax
import jax.numpy as jnp
from jax import lax
from jax.experimental import pallas as pl
from jax.experimental.pallas import tpu as pltpu


LANES = 128            # vreg lane width (minor dim)
SUBLANES = 8           # f32 sublanes per vreg
ROW_ALIGN = 16         # block-row alignment (covers bf16 (16,128) native tiling)
CHUNK_ROWS = 256       # rows per fused inner-loop chunk (x+t = 256 KiB f32)
MAX_TILE_ROWS = 4096   # 2 MiB f32 per operand per pipeline buffer
NUM_STATS = 5          # Sx, St, Sxx, Stt, Sxt
SMALL_N = 1 << 16      # below this the kernel is pure launch overhead -> jnp path
_KERNEL_DTYPES = (jnp.float32, jnp.bfloat16)   # kept native in HBM; others upcast


def _cdiv(a: int, b: int) -> int:
    return (a + b - 1) // b


def _tensorcores_per_chip() -> int:
    """Best-effort TensorCore-per-chip query (2 on v7x-class parts)."""
    try:
        info = pltpu.get_tpu_info()
    except Exception:
        return 1
    for name in ("tensorcores_per_chip", "num_tensorcores", "num_cores",
                 "cores_per_chip", "core_count"):
        v = getattr(info, name, None)
        if isinstance(v, int) and 1 <= v <= 16:
            return v
    return 1


def _pearson_sums_kernel(mu_ref, x_ref, t_ref, acc_ref, *,
                         steps, chunk, valid_rows, needs_mask):
    """Accumulate the five (mean-shifted) partial sums into a per-core block.

    acc_ref is the (NUM_STATS, 8, 128) output block (leading core dim is
    squeezed).  Its block index is constant along the reduction grid axis, so
    it stays resident in VMEM: zero it at step 0, accumulate every step, and
    Pallas writes it back to HBM once this core's row range is done.
    """
    s = pl.program_id(1)                       # reduction axis ("arbitrary")

    @pl.when(s == 0)
    def _init():
        acc_ref[...] = jnp.zeros_like(acc_ref)

    tile_rows = x_ref.shape[0]
    # Shift estimates broadcast along lanes: (1, 128) rows.
    mu_x = mu_ref[0:1, :]
    mu_t = mu_ref[1:2, :]
    # Global row offset of this grid step (un-clamped; used only for masking —
    # duplicated/rounded-up steps therefore mask to all-zero contributions).
    tile_row0 = (pl.program_id(0) * steps + s) * tile_rows

    def accum(r0, rows, carry):
        xc = x_ref[pl.ds(r0, rows), :].astype(jnp.float32) - mu_x
        tc = t_ref[pl.ds(r0, rows), :].astype(jnp.float32) - mu_t
        if needs_mask:
            rid = tile_row0 + r0 + lax.broadcasted_iota(jnp.int32, (rows, 1), 0)
            ok = rid < valid_rows
            xc = jnp.where(ok, xc, 0.0)
            tc = jnp.where(ok, tc, 0.0)

        def vsum(v):   # (rows, 128) -> (8, 128): whole-vreg VPU adds only
            return v.reshape(rows // SUBLANES, SUBLANES, LANES).sum(axis=0)

        sx, st, sxx, stt, sxt = carry
        return (sx + vsum(xc), st + vsum(tc), sxx + vsum(xc * xc),
                stt + vsum(tc * tc), sxt + vsum(xc * tc))

    zero = jnp.zeros((SUBLANES, LANES), jnp.float32)
    carry = (zero, zero, zero, zero, zero)

    n_full = tile_rows // chunk
    rem = tile_rows % chunk
    if n_full:
        carry = lax.fori_loop(
            0, n_full,
            lambda i, c: accum(pl.multiple_of(i * chunk, chunk), chunk, c),
            carry, unroll=2)
    if rem:
        carry = accum(n_full * chunk, rem, carry)

    for i in range(NUM_STATS):
        acc_ref[i] += carry[i]


def _pearson_jnp(x, t):
    """Small-N fast path (centered, pure jnp)."""
    x = x.astype(jnp.float32)
    t = t.astype(jnp.float32)
    xd = x - jnp.mean(x)
    td = t - jnp.mean(t)
    return (jnp.sum(xd * td)
            / jnp.sqrt(jnp.sum(xd * xd) * jnp.sum(td * td))).astype(jnp.float32)


def pearson(inp: jax.Array, target: jax.Array, *,
            small_n_threshold: int = SMALL_N) -> jax.Array:
    """Pallas TPU implementation of Pearson.forward(input, target)."""
    assert inp.shape == target.shape, "input and target must have the same shape"
    x = inp.reshape(-1)
    t = target.reshape(-1)
    n = x.shape[0]

    # Per-array dtype policy: keep f32/bf16 native in HBM (a bf16 operand
    # paired with an f32 one stays bf16 -> half the DMA bytes); upcast others.
    if x.dtype not in _KERNEL_DTYPES:
        x = x.astype(jnp.float32)
    if t.dtype not in _KERNEL_DTYPES:
        t = t.astype(jnp.float32)

    kernel_rows = n // LANES          # lane-aligned rows handled by the kernel
    if n < small_n_threshold or kernel_rows < ROW_ALIGN:
        return _pearson_jnp(x, t)     # kernel would be pure launch overhead

    kernel_elems = kernel_rows * LANES
    tail = n - kernel_elems           # < 128 elements, folded in with jnp glue

    # Cheap shift estimate from the first <=2048 elements (tiny HBM read).
    est = min(n, ROW_ALIGN * LANES)
    mu_x = jnp.mean(x[:est].astype(jnp.float32))
    mu_t = jnp.mean(t[:est].astype(jnp.float32))
    mu = jnp.broadcast_to(jnp.stack([mu_x, mu_t])[:, None], (2, LANES))

    # Lane-dense [rows, 128] view.  When n is a multiple of 128 (the common
    # case) this is a free reshape — no jnp.pad / full-array copy.  Otherwise
    # only the <128-element remainder goes through the glue below (the prefix
    # slice may cost one copy; still cheaper/simpler than padding the stream).
    x2 = x[:kernel_elems].reshape(kernel_rows, LANES)
    t2 = t[:kernel_elems].reshape(kernel_rows, LANES)

    # ---- tiling / core split -------------------------------------------
    if _tensorcores_per_chip() >= 2:
        # 2-TC parts (v7x-class): split as soon as each core gets >=1024 rows.
        num_cores = 2 if kernel_rows >= 2 * 1024 else 1
    else:
        # Single-TC / unknown parts: the extra "parallel" axis is ~free, but
        # only bother when each half is at least one full-size tile (this
        # still covers v7x if the hardware query above is unavailable).
        num_cores = 2 if kernel_rows >= 2 * MAX_TILE_ROWS else 1

    rows_per_core = _cdiv(kernel_rows, num_cores)
    tile_rows = min(MAX_TILE_ROWS,
                    max(ROW_ALIGN, (rows_per_core // ROW_ALIGN) * ROW_ALIGN))
    total_blocks = _cdiv(kernel_rows, tile_rows)
    steps = _cdiv(total_blocks, num_cores)
    last_block = total_blocks - 1
    # Grid steps past the data (tail block / core-split rounding) re-read the
    # last real block (kept in bounds by the min() in the index_map) and are
    # fully masked out in-kernel.
    needs_mask = (total_blocks * tile_rows != kernel_rows
                  or num_cores * steps != total_blocks)

    in_map = lambda c, s: (jnp.minimum(c * steps + s, last_block), 0)
    mu_map = lambda c, s: (0, 0)

    kernel = functools.partial(
        _pearson_sums_kernel, steps=steps, chunk=CHUNK_ROWS,
        valid_rows=kernel_rows, needs_mask=needs_mask)

    out = pl.pallas_call(
        kernel,
        out_shape=jax.ShapeDtypeStruct(
            (num_cores, NUM_STATS, SUBLANES, LANES), jnp.float32),
        grid_spec=pltpu.PrefetchScalarGridSpec(
            num_scalar_prefetch=0,
            grid=(num_cores, steps),
            in_specs=[
                pl.BlockSpec((2, LANES), mu_map),
                pl.BlockSpec((tile_rows, LANES), in_map),
                pl.BlockSpec((tile_rows, LANES), in_map),
            ],
            # One resident, lane-dense accumulator block per core; its block
            # index is constant along the reduction axis (P3 accumulator).
            out_specs=pl.BlockSpec((None, NUM_STATS, SUBLANES, LANES),
                                   lambda c, s: (c, 0, 0, 0)),
        ),
        compiler_params=pltpu.CompilerParams(
            dimension_semantics=("parallel", "arbitrary"),
            # 2 operands x 2 pipeline buffers x <=2 MiB (f32) plus the fused
            # inner-loop temporaries stay far below this on v5e/v6e/v7x.
            vmem_limit_bytes=32 * 1024 * 1024,
        ),
    )(mu, x2, t2)

    # Scalar glue: combine cores/sublanes/lanes, add the <128-element tail,
    # then the (shift-invariant) Pearson formula.
    sums = out.sum(axis=(0, 2, 3))                     # (5,)
    if tail:
        xt = x[kernel_elems:].astype(jnp.float32) - mu_x
        tt = t[kernel_elems:].astype(jnp.float32) - mu_t
        sums = sums + jnp.stack([jnp.sum(xt), jnp.sum(tt), jnp.sum(xt * xt),
                                 jnp.sum(tt * tt), jnp.sum(xt * tt)])

    sx, st, sxx, stt, sxt = (sums[i] for i in range(NUM_STATS))
    nf = jnp.float32(n)
    cov = sxt - sx * st / nf
    var_x = sxx - sx * sx / nf
    var_t = stt - st * st / nf
    return (cov / jnp.sqrt(var_x * var_t)).astype(jnp.float32)


def pearson_ref(a, b):
    return jnp.corrcoef(jnp.stack([a.reshape(-1).astype(jnp.float32),
                                   b.reshape(-1).astype(jnp.float32)]))[0, 1]


if __name__ == "__main__":
    key = jax.random.PRNGKey(0)
    k1, k2, k3, k4 = jax.random.split(key, 4)

    # torch.corrcoef requires <=2-D, so forward() implies 1-D input/target
    # vectors; n = 2 * 4 * 16 * 16 = 2048.
    n = 2048
    inp = jax.random.normal(k1, (n,), dtype=jnp.float32)
    noise = jax.random.normal(k2, (n,), dtype=jnp.float32)
    target = 0.8 * inp + 0.3 * noise + 1.0   # correlated, offset target

    ref = pearson_ref(inp, target)

    # Default path (small-N fast path).
    out_fast = jax.block_until_ready(pearson(inp, target))
    assert jnp.allclose(out_fast, ref, rtol=1e-4, atol=1e-4), (out_fast, ref)

    # Force the Pallas kernel path (exercises the TPU kernel itself).
    out_kern = jax.block_until_ready(pearson(inp, target, small_n_threshold=0))
    assert jnp.allclose(out_kern, ref, rtol=1e-4, atol=1e-4), (out_kern, ref)

    # Ragged size: exercises in-kernel tail masking + the <128-element glue
    # (no jnp.pad copies anywhere).
    m = 2048 + 333
    a = jax.random.normal(k3, (m,), dtype=jnp.float32)
    b = 0.5 * a + jax.random.normal(k4, (m,), dtype=jnp.float32) - 2.0
    ref2 = pearson_ref(a, b)
    out2 = jax.block_until_ready(pearson(a, b, small_n_threshold=0))
    assert jnp.allclose(out2, ref2, rtol=1e-4, atol=1e-4), (out2, ref2)

    # Mixed precision: bf16 input stays bf16 in HBM, f32 target stays f32.
    xb = inp.astype(jnp.bfloat16)
    ref3 = pearson_ref(xb.astype(jnp.float32), target)
    out3 = jax.block_until_ready(pearson(xb, target, small_n_threshold=0))
    assert jnp.allclose(out3, ref3, rtol=1e-3, atol=1e-3), (out3, ref3)

    print("KERNEL_OK")
</pallas_src>

<mosaic_0001>
module attributes {stable_mosaic.version = 11 : i64} {
  func.func @_pearson_sums_kernel(%arg0: i32, %arg1: i32, %arg2: memref<2x128xf32, #tpu.memory_space<vmem>>, %arg3: memref<16x128xf32, #tpu.memory_space<vmem>>, %arg4: memref<16x128xf32, #tpu.memory_space<vmem>>, %arg5: memref<1x5x8x128xf32, #tpu.memory_space<vmem>>) attributes {dimension_semantics = [#tpu.dimension_semantics<parallel>, #tpu.dimension_semantics<arbitrary>], iteration_bounds = array<i64: 1, 1>, scalar_prefetch = 0 : i64, scratch_operands = 0 : i64, tpu.core_type = #tpu.core_type<tc>, window_params = [{pipeline_mode = #tpu.pipeline_mode<synchronous>, transform_indices = @transform_0, window_bounds = array<i64: 2, 128>}, {transform_indices = @transform_1, window_bounds = array<i64: 16, 128>}, {transform_indices = @transform_2, window_bounds = array<i64: 16, 128>}, {transform_indices = @transform_3, window_bounds = array<i64: 1, 5, 8, 128>}]} {
    %c0_i32 = arith.constant 0 : i32
    %0 = arith.cmpi eq, %arg1, %c0_i32 : i32
    %1 = arith.extui %0 : i1 to i32
    %c0_i32_0 = arith.constant 0 : i32
    %2 = arith.cmpi ne, %1, %c0_i32_0 : i32
    scf.if %2 {
      %cst_49 = arith.constant 0.000000e+00 : f32
      %60 = vector.broadcast %cst_49 : f32 to vector<5x8x128xf32>
      %c0_50 = arith.constant 0 : index
      %c0_51 = arith.constant 0 : index
      %c0_52 = arith.constant 0 : index
      %c0_53 = arith.constant 0 : index
      %61 = vector.load %arg5[%c0_50, %c0_51, %c0_52, %c0_53] : memref<1x5x8x128xf32, #tpu.memory_space<vmem>>, vector<1x5x8x128xf32>
      %62 = vector.shape_cast %61 : vector<1x5x8x128xf32> to vector<5x8x128xf32>
      %63 = vector.shape_cast %60 : vector<5x8x128xf32> to vector<1x5x8x128xf32>
      tpu.vector_store %arg5[%c0_50, %c0_51, %c0_52, %c0_53], %63 {strides = array<i32>} : memref<1x5x8x128xf32, #tpu.memory_space<vmem>>, vector<1x5x8x128xf32>,
    } else {
    }
    %c0 = arith.constant 0 : index
    %c0_1 = arith.constant 0 : index
    %3 = vector.load %arg2[%c0, %c0_1] : memref<2x128xf32, #tpu.memory_space<vmem>>, vector<1x128xf32>
    %c1 = arith.constant 1 : index
    %c0_2 = arith.constant 0 : index
    %4 = vector.load %arg2[%c1, %c0_2] : memref<2x128xf32, #tpu.memory_space<vmem>>, vector<1x128xf32>
    %cst = arith.constant 0.000000e+00 : f32
    %5 = vector.broadcast %cst : f32 to vector<8x128xf32>
    %c0_3 = arith.constant 0 : index
    %c0_4 = arith.constant 0 : index
    %6 = vector.load %arg3[%c0_3, %c0_4] : memref<16x128xf32, #tpu.memory_space<vmem>>, vector<16x128xf32>
    %7 = vector.broadcast %3 : vector<1x128xf32> to vector<16x128xf32>
    %8 = arith.subf %6, %7 : vector<16x128xf32>
    %c0_5 = arith.constant 0 : index
    %c0_6 = arith.constant 0 : index
    %9 = vector.load %arg4[%c0_5, %c0_6] : memref<16x128xf32, #tpu.memory_space<vmem>>, vector<16x128xf32>
    %10 = vector.broadcast %4 : vector<1x128xf32> to vector<16x128xf32>
    %11 = arith.subf %9, %10 : vector<16x128xf32>
    %12 = vector.shape_cast %8 : vector<16x128xf32> to vector<2x8x128xf32>
    %cst_7 = arith.constant dense<0.000000e+00> : vector<8x128xf32>
    %13 = vector.multi_reduction <add>, %12, %cst_7 [0] : vector<2x8x128xf32> to vector<8x128xf32>
    %14 = arith.addf %5, %13 : vector<8x128xf32>
    %15 = vector.shape_cast %11 : vector<16x128xf32> to vector<2x8x128xf32>
    %cst_8 = arith.constant dense<0.000000e+00> : vector<8x128xf32>
    %16 = vector.multi_reduction <add>, %15, %cst_8 [0] : vector<2x8x128xf32> to vector<8x128xf32>
    %17 = arith.addf %5, %16 : vector<8x128xf32>
    %18 = arith.mulf %8, %8 : vector<16x128xf32>
    %19 = vector.shape_cast %18 : vector<16x128xf32> to vector<2x8x128xf32>
    %cst_9 = arith.constant dense<0.000000e+00> : vector<8x128xf32>
    %20 = vector.multi_reduction <add>, %19, %cst_9 [0] : vector<2x8x128xf32> to vector<8x128xf32>
    %21 = arith.addf %5, %20 : vector<8x128xf32>
    %22 = arith.mulf %11, %11 : vector<16x128xf32>
    %23 = vector.shape_cast %22 : vector<16x128xf32> to vector<2x8x128xf32>
    %cst_10 = arith.constant dense<0.000000e+00> : vector<8x128xf32>
    %24 = vector.multi_reduction <add>, %23, %cst_10 [0] : vector<2x8x128xf32> to vector<8x128xf32>
    %25 = arith.addf %5, %24 : vector<8x128xf32>
    %26 = arith.mulf %8, %11 : vector<16x128xf32>
    %27 = vector.shape_cast %26 : vector<16x128xf32> to vector<2x8x128xf32>
    %cst_11 = arith.constant dense<0.000000e+00> : vector<8x128xf32>
    %28 = vector.multi_reduction <add>, %27, %cst_11 [0] : vector<2x8x128xf32> to vector<8x128xf32>
    %29 = arith.addf %5, %28 : vector<8x128xf32>
    %c0_12 = arith.constant 0 : index
    %c0_13 = arith.constant 0 : index
    %c0_14 = arith.constant 0 : index
    %c0_15 = arith.constant 0 : index
    %30 = vector.load %arg5[%c0_12, %c0_13, %c0_14, %c0_15] : memref<1x5x8x128xf32, #tpu.memory_space<vmem>>, vector<1x1x8x128xf32>
    %31 = vector.shape_cast %30 : vector<1x1x8x128xf32> to vector<8x128xf32>
    %32 = arith.addf %31, %14 : vector<8x128xf32>
    %c0_16 = arith.constant 0 : index
    %c0_17 = arith.constant 0 : index
    %c0_18 = arith.constant 0 : index
    %c0_19 = arith.constant 0 : index
    %33 = vector.load %arg5[%c0_16, %c0_17, %c0_18, %c0_19] : memref<1x5x8x128xf32, #tpu.memory_space<vmem>>, vector<1x1x8x128xf32>
    %34 = vector.shape_cast %33 : vector<1x1x8x128xf32> to vector<8x128xf32>
    %35 = vector.shape_cast %32 : vector<8x128xf32> to vector<1x1x8x128xf32>
    tpu.vector_store %arg5[%c0_16, %c0_17, %c0_18, %c0_19], %35 {strides = array<i32>} : memref<1x5x8x128xf32, #tpu.memory_space<vmem>>, vector<1x1x8x128xf32>,
    %c0_20 = arith.constant 0 : index
    %c1_21 = arith.constant 1 : index
    %c0_22 = arith.constant 0 : index
    %c0_23 = arith.constant 0 : index
    %36 = vector.load %arg5[%c0_20, %c1_21, %c0_22, %c0_23] : memref<1x5x8x128xf32, #tpu.memory_space<vmem>>, vector<1x1x8x128xf32>
    %37 = vector.shape_cast %36 : vector<1x1x8x128xf32> to vector<8x128xf32>
    %38 = arith.addf %37, %17 : vector<8x128xf32>
    %c0_24 = arith.constant 0 : index
    %c1_25 = arith.constant 1 : index
    %c0_26 = arith.constant 0 : index
    %c0_27 = arith.constant 0 : index
    %39 = vector.load %arg5[%c0_24, %c1_25, %c0_26, %c0_27] : memref<1x5x8x128xf32, #tpu.memory_space<vmem>>, vector<1x1x8x128xf32>
    %40 = vector.shape_cast %39 : vector<1x1x8x128xf32> to vector<8x128xf32>
    %41 = vector.shape_cast %38 : vector<8x128xf32> to vector<1x1x8x128xf32>
    tpu.vector_store %arg5[%c0_24, %c1_25, %c0_26, %c0_27], %41 {strides = array<i32>} : memref<1x5x8x128xf32, #tpu.memory_space<vmem>>, vector<1x1x8x128xf32>,
    %c0_28 = arith.constant 0 : index
    %c2 = arith.constant 2 : index
    %c0_29 = arith.constant 0 : index
    %c0_30 = arith.constant 0 : index
    %42 = vector.load %arg5[%c0_28, %c2, %c0_29, %c0_30] : memref<1x5x8x128xf32, #tpu.memory_space<vmem>>, vector<1x1x8x128xf32>
    %43 = vector.shape_cast %42 : vector<1x1x8x128xf32> to vector<8x128xf32>
    %44 = arith.addf %43, %21 : vector<8x128xf32>
    %c0_31 = arith.constant 0 : index
    %c2_32 = arith.constant 2 : index
    %c0_33 = arith.constant 0 : index
    %c0_34 = arith.constant 0 : index
    %45 = vector.load %arg5[%c0_31, %c2_32, %c0_33, %c0_34] : memref<1x5x8x128xf32, #tpu.memory_space<vmem>>, vector<1x1x8x128xf32>
    %46 = vector.shape_cast %45 : vector<1x1x8x128xf32> to vector<8x128xf32>
    %47 = vector.shape_cast %44 : vector<8x128xf32> to vector<1x1x8x128xf32>
    tpu.vector_store %arg5[%c0_31, %c2_32, %c0_33, %c0_34], %47 {strides = array<i32>} : memref<1x5x8x128xf32, #tpu.memory_space<vmem>>, vector<1x1x8x128xf32>,
    %c0_35 = arith.constant 0 : index
    %c3 = arith.constant 3 : index
    %c0_36 = arith.constant 0 : index
    %c0_37 = arith.constant 0 : index
    %48 = vector.load %arg5[%c0_35, %c3, %c0_36, %c0_37] : memref<1x5x8x128xf32, #tpu.memory_space<vmem>>, vector<1x1x8x128xf32>
    %49 = vector.shape_cast %48 : vector<1x1x8x128xf32> to vector<8x128xf32>
    %50 = arith.addf %49, %25 : vector<8x128xf32>
    %c0_38 = arith.constant 0 : index
    %c3_39 = arith.constant 3 : index
    %c0_40 = arith.constant 0 : index
    %c0_41 = arith.constant 0 : index
    %51 = vector.load %arg5[%c0_38, %c3_39, %c0_40, %c0_41] : memref<1x5x8x128xf32, #tpu.memory_space<vmem>>, vector<1x1x8x128xf32>
    %52 = vector.shape_cast %51 : vector<1x1x8x128xf32> to vector<8x128xf32>
    %53 = vector.shape_cast %50 : vector<8x128xf32> to vector<1x1x8x128xf32>
    tpu.vector_store %arg5[%c0_38, %c3_39, %c0_40, %c0_41], %53 {strides = array<i32>} : memref<1x5x8x128xf32, #tpu.memory_space<vmem>>, vector<1x1x8x128xf32>,
    %c0_42 = arith.constant 0 : index
    %c4 = arith.constant 4 : index
    %c0_43 = arith.constant 0 : index
    %c0_44 = arith.constant 0 : index
    %54 = vector.load %arg5[%c0_42, %c4, %c0_43, %c0_44] : memref<1x5x8x128xf32, #tpu.memory_space<vmem>>, vector<1x1x8x128xf32>
    %55 = vector.shape_cast %54 : vector<1x1x8x128xf32> to vector<8x128xf32>
    %56 = arith.addf %55, %29 : vector<8x128xf32>
    %c0_45 = arith.constant 0 : index
    %c4_46 = arith.constant 4 : index
    %c0_47 = arith.constant 0 : index
    %c0_48 = arith.constant 0 : index
    %57 = vector.load %arg5[%c0_45, %c4_46, %c0_47, %c0_48] : memref<1x5x8x128xf32, #tpu.memory_space<vmem>>, vector<1x1x8x128xf32>
    %58 = vector.shape_cast %57 : vector<1x1x8x128xf32> to vector<8x128xf32>
    %59 = vector.shape_cast %56 : vector<8x128xf32> to vector<1x1x8x128xf32>
    tpu.vector_store %arg5[%c0_45, %c4_46, %c0_47, %c0_48], %59 {strides = array<i32>} : memref<1x5x8x128xf32, #tpu.memory_space<vmem>>, vector<1x1x8x128xf32>,
    return
  }
  func.func @transform_0(%arg0: i32, %arg1: i32) -> (i32, i32) {
    %c0_i32 = arith.constant 0 : i32
    %c0_i32_0 = arith.constant 0 : i32
    %c0_i32_1 = arith.constant 0 : i32
    return %c0_i32, %c0_i32_0 : i32, i32
  }
  func.func @transform_1(%arg0: i32, %arg1: i32) -> (i32, i32) {
    %c1_i32 = arith.constant 1 : i32
    %0 = arith.muli %arg0, %c1_i32 : i32
    %1 = arith.addi %0, %arg1 : i32
    %c0_i32 = arith.constant 0 : i32
    %2 = arith.minsi %1, %c0_i32 : i32
    %c0_i32_0 = arith.constant 0 : i32
    %c0_i32_1 = arith.constant 0 : i32
    return %2, %c0_i32_0 : i32, i32
  }
  func.func @transform_2(%arg0: i32, %arg1: i32) -> (i32, i32) {
    %c1_i32 = arith.constant 1 : i32
    %0 = arith.muli %arg0, %c1_i32 : i32
    %1 = arith.addi %0, %arg1 : i32
    %c0_i32 = arith.constant 0 : i32
    %2 = arith.minsi %1, %c0_i32 : i32
    %c0_i32_0 = arith.constant 0 : i32
    %c0_i32_1 = arith.constant 0 : i32
    return %2, %c0_i32_0 : i32, i32
  }
  func.func @transform_3(%arg0: i32, %arg1: i32) -> (i32, i32, i32, i32) {
    %c0_i32 = arith.constant 0 : i32
    %c0_i32_0 = arith.constant 0 : i32
    %c0_i32_1 = arith.constant 0 : i32
    %c0_i32_2 = arith.constant 0 : i32
    return %arg0, %c0_i32, %c0_i32_0, %c0_i32_1 : i32, i32, i32, i32
  }
}

</mosaic_0001>

<llo_original>
// kernel: tpu_custom_call.1
$region0: #{tpu_custom_call.1}
  #allocation0 [shape = 'u32[]', space=smem, size = 0x4, offset = 0x4, fixed_abs, tag = 'smem constant byte address 0x4 - core index']
  #allocation1 [shape = 'u32[144,128]{1,0:T(1,128)}', space=vmem, size = 0x12000, scoped, tag = 'internal scratch']
  %s0 = inlined_call_operand.hbm [shape: f32[2,128], index: 0, kind: input, shape index: {}]
  %s1 = inlined_call_operand.hbm [shape: f32[16,128], index: 1, kind: input, shape index: {}]
  %s2 = inlined_call_operand.hbm [shape: f32[16,128], index: 2, kind: input, shape index: {}]
  %s3 = inlined_call_operand.hbm [shape: f32[1,5,8,128], index: 3, kind: output, shape index: {}]
  %s4 = sld [smem:[#allocation0]]
  $region38: #{tpu_custom_call.1} parent=0
    _
  %s6 = ssub.s32 1, %s4
  %s7 = scalar_select 0, %s6, %s4
  $region1: #{tpu_custom_call.1} parent=0
    #allocation2 [shape = 'u8[1024]{0}', space=vmem, size = 0x400, scoped, tag = 'input window, operand 0, single buffered']
    #allocation3 [shape = 's32[1]{0}', space=sflag, size = 0x4, scoped, tag = 'scoped memory for tpu_custom_call.1']
    #allocation4 [shape = 's32[1]{0}', space=sflag, size = 0x4, scoped, tag = 'scoped memory for tpu_custom_call.1']
    #allocation5 [shape = 'u8[8192]{0}', space=vmem, size = 0x2000, scoped, tag = 'input window, operand 1, single buffered']
    #allocation6 [shape = 's32[1]{0}', space=sflag, size = 0x4, scoped, tag = 'scoped memory for tpu_custom_call.1']
    #allocation7 [shape = 'u8[8192]{0}', space=vmem, size = 0x2000, scoped, tag = 'input window, operand 2, single buffered']
    #allocation8 [shape = 'u8[20480]{0}', space=vmem, size = 0x5000, scoped, tag = 'output window, operand 0, single buffered']
    %8 = vsyncpa [#allocation3], 0
    %9 = vsyncpa [#allocation6], 0
    %10 = vsyncpa [#allocation4], 0
    // Predicated region
    $region2: #{tpu_custom_call.1} parent=1 // pred_check
      _
    $region3: #{tpu_custom_call.1} parent=1 // pred_check_branch
      %12 = sbr.rel (0) target = $region5
    $region4: #{tpu_custom_call.1} parent=1 // pred_region
      %s14 = ssub.s32 32, 32
      %15 = vsyncadd [#allocation3], %s14
      %s17 = sshll.u32 [#allocation2], 4
      %s18 = int_to_ptr.vmem [resolvable:$true] %s17
      %20 = dma.hbm_to_vmem [thread:$0]  %s0, 32, %s18, [#allocation3]
    $region5: #{tpu_custom_call.1} parent=1 // pred_fallthru
      _
    // Predicated region
    $region6: #{tpu_custom_call.1} parent=1 // pred_check
      _
    $region7: #{tpu_custom_call.1} parent=1 // pred_check_branch
      %22 = sbr.rel (0) target = $region9
    $region8: #{tpu_custom_call.1} parent=1 // pred_region
      %s23 = sadd.s32 0, 0
      %p24 = scmp.lt.s32.totalorder %s23, 0
      %s25 = scalar_select %p24, %s23, 0
      %s26 = smul.u32 2, %s25
      %s28 = ssub.s32 256, 256
      %29 = vsyncadd [#allocation6], %s28
      %s30 = smul.addr %s26, 128
      %s31 = scalar_lea.hbm %s1, %s30
      %s32 = sshll.u32 [#allocation5], 4
      %s33 = int_to_ptr.vmem [resolvable:$true] %s32
      %38 = dma.hbm_to_vmem [thread:$0]  %s31, 256, %s33, [#allocation6], 128, 128, 8
    $region9: #{tpu_custom_call.1} parent=1 // pred_fallthru
      _
    // Predicated region
    $region10: #{tpu_custom_call.1} parent=1 // pred_check
      _
    $region11: #{tpu_custom_call.1} parent=1 // pred_check_branch
      %40 = sbr.rel (0) target = $region13
    $region12: #{tpu_custom_call.1} parent=1 // pred_region
      %s41 = sadd.s32 0, 0
      %p42 = scmp.lt.s32.totalorder %s41, 0
      %s43 = scalar_select %p42, %s41, 0
      %s44 = smul.u32 2, %s43
      %s46 = ssub.s32 256, 256
      %47 = vsyncadd [#allocation6], %s46
      %s48 = smul.addr %s44, 128
      %s49 = scalar_lea.hbm %s2, %s48
      %s50 = sshll.u32 [#allocation7], 4
      %s51 = int_to_ptr.vmem [resolvable:$true] %s50
      %56 = dma.hbm_to_vmem [thread:$0]  %s49, 256, %s51, [#allocation6], 128, 128, 8
    $region13: #{tpu_custom_call.1} parent=1 // pred_fallthru
      _
    // Predicated region
    $region14: #{tpu_custom_call.1} parent=1 // pred_check
      _
    $region15: #{tpu_custom_call.1} parent=1 // pred_check_branch
      %58 = sbr.rel (0) target = $region17
    $region16: #{tpu_custom_call.1} parent=1 // pred_region
      %59 = dma.done [#allocation3], 32
    $region17: #{tpu_custom_call.1} parent=1 // pred_fallthru
      _
    // Predicated region
    $region18: #{tpu_custom_call.1} parent=1 // pred_check
      _
    $region19: #{tpu_custom_call.1} parent=1 // pred_check_branch
      %61 = sbr.rel (0) target = $region21
    $region20: #{tpu_custom_call.1} parent=1 // pred_region
      %62 = dma.done [#allocation6], 256
    $region21: #{tpu_custom_call.1} parent=1 // pred_fallthru
      _
    // Predicated region
    $region22: #{tpu_custom_call.1} parent=1 // pred_check
      _
    $region23: #{tpu_custom_call.1} parent=1 // pred_check_branch
      %64 = sbr.rel (0) target = $region25
    $region24: #{tpu_custom_call.1} parent=1 // pred_region
      %65 = dma.done [#allocation6], 256
    $region25: #{tpu_custom_call.1} parent=1 // pred_fallthru
      _
    %s66 = sadd.s32 0, 0
    %p67 = scmp.lt.s32.totalorder %s66, 0
    %s68 = scalar_select %p67, %s66, 0
    %s69 = smul.u32 2, %s68
    %s70 = sadd.s32 0, 0
    %p71 = scmp.lt.s32.totalorder %s70, 0
    %s72 = scalar_select %p71, %s70, 0
    %s73 = smul.u32 2, %s72
    %p74 = scmp.eq.s32.totalorder 0, 0
    // Predicated region
    $region26: #{tpu_custom_call.1} parent=1 // pred_check
      %p75 = pneg %p74
    $region27: #{tpu_custom_call.1} parent=1 // pred_check_branch
      %77 = sbr.rel (%p75) target = $region29
    $region28: #{tpu_custom_call.1} parent=1 // pred_region
      %78 = vst [vmem:[#allocation8] sm:$0xff] 0.0
      %79 = vst [vmem:[#allocation8 + $0x8] sm:$0xff] 0.0
      %80 = vst [vmem:[#allocation8 + $0x10] sm:$0xff] 0.0
      %81 = vst [vmem:[#allocation8 + $0x18] sm:$0xff] 0.0
      %82 = vst [vmem:[#allocation8 + $0x20] sm:$0xff] 0.0
    $region29: #{tpu_custom_call.1} parent=1 // pred_fallthru
      _
    %v83 = vld [vmem:[#allocation2] sm:$0x1]
    %v84 = vld [vmem:[#allocation2 + $0x1] sm:$0x1]
    %v85 = vld [vmem:[#allocation5] sm:$0xff]
    %v86 = vld [vmem:[#allocation5 + $0x8] sm:$0xff]
    %v87 = vlaneseq
    %v88 = vshrl.u32 %v87, 7
    %v89 = vsub.s32 0, %v88
    %v90 = vrot.slane %v83, %v89
    %v91 = vsub.f32 %v85, %v90
    %v92 = vsub.f32 %v86, %v90
    %v93 = vld [vmem:[#allocation7] sm:$0xff]
    %v94 = vld [vmem:[#allocation7 + $0x8] sm:$0xff]
    %v95 = vlaneseq
    %v96 = vshrl.u32 %v95, 7
    %v97 = vsub.s32 0, %v96
    %v98 = vrot.slane %v84, %v97
    %v99 = vsub.f32 %v93, %v98
    %v100 = vsub.f32 %v94, %v98
    %v101 = vadd.f32 %v91, %v92
    %v102 = vadd.f32 %v101, 0.0
    %v103 = vadd.f32 %v99, %v100
    %v104 = vadd.f32 %v103, 0.0
    %v105 = vmul.f32 %v91, %v91
    %v106 = vmul.f32 %v92, %v92
    %v107 = vadd.f32 %v105, %v106
    %v108 = vadd.f32 %v107, 0.0
    %v109 = vmul.f32 %v99, %v99
    %v110 = vmul.f32 %v100, %v100
    %v111 = vadd.f32 %v109, %v110
    %v112 = vadd.f32 %v111, 0.0
    %v113 = vmul.f32 %v91, %v99
    %v114 = vmul.f32 %v92, %v100
    %v115 = vadd.f32 %v113, %v114
    %v116 = vadd.f32 %v115, 0.0
    %v117 = vld [vmem:[#allocation8] sm:$0xff]
    %v118 = vadd.f32 %v117, %v102
    %119 = vst [vmem:[#allocation8] sm:$0xff] %v118
    %s120 = scalar_lea.vmem [#allocation8], 8
    %v121 = vld [vmem:[%s120] sm:$0xff]
    %v122 = vadd.f32 %v121, %v104
    %123 = vst [vmem:[%s120] sm:$0xff] %v122
    %s124 = scalar_lea.vmem [#allocation8], 16
    %v125 = vld [vmem:[%s124] sm:$0xff]
    %v126 = vadd.f32 %v125, %v108
    %127 = vst [vmem:[%s124] sm:$0xff] %v126
    %s128 = scalar_lea.vmem [#allocation8], 24
    %v129 = vld [vmem:[%s128] sm:$0xff]
    %v130 = vadd.f32 %v129, %v112
    %131 = vst [vmem:[%s128] sm:$0xff] %v130
    %s132 = scalar_lea.vmem [#allocation8], 32
    %v133 = vld [vmem:[%s132] sm:$0xff]
    %v134 = vadd.f32 %v133, %v116
    %135 = vst [vmem:[%s132] sm:$0xff] %v134
    // Predicated region
    $region30: #{tpu_custom_call.1} parent=1 // pred_check
      _
    $region31: #{tpu_custom_call.1} parent=1 // pred_check_branch
      %137 = sbr.rel (0) target = $region33
    $region32: #{tpu_custom_call.1} parent=1 // pred_region
      %s139 = ssub.s32 640, 640
      %140 = vsyncadd [#allocation4], %s139
      %s141 = sshll.u32 [#allocation8], 4
      %s142 = int_to_ptr.vmem [resolvable:$true] %s141
      %147 = dma.vmem_to_hbm [thread:$0]  %s142, 640, %s3, [#allocation4], 128, 128, 8
    $region33: #{tpu_custom_call.1} parent=1 // pred_fallthru
      _
    // Predicated region
    $region34: #{tpu_custom_call.1} parent=1 // pred_check
      _
    $region35: #{tpu_custom_call.1} parent=1 // pred_check_branch
      %149 = sbr.rel (0) target = $region37
    $region36: #{tpu_custom_call.1} parent=1 // pred_region
      %150 = dma.done [#allocation4], 640
    $region37: #{tpu_custom_call.1} parent=1 // pred_fallthru
      _
    %151 = vsyncpa [#allocation3], 1
    %152 = vsyncpa [#allocation6], 1
    %153 = vsyncpa [#allocation4], 1

</llo_original>
